<compile_context>
chip_gen: v7x
topology: tpu7x:2x2x1
jax: 0.10.0
libtpu: 0.0.40
codegen_flags: <defaults>
</compile_context>

<pallas_src>
import math

import jax
import jax.numpy as jnp
from jax.experimental import pallas as pl
from jax.experimental.pallas import tpu as pltpu

GMM_COMP = 5                # self.gmm_comp_num
GMM_FEAT = GMM_COMP * 6     # 30
PAD_B = 128                 # static lane padding for rel rows / box pairs
# TODO(synk): if the number of valid relations / box pairs can exceed PAD_B,
# raise PAD_B (multiple of 128) or tile the lane axis with a grid.


# ---------------------------------------------------------------------------
# In-kernel helper (traced inside the Pallas body)
# ---------------------------------------------------------------------------
def _greedy_means(pi_raw, u_x, u_y):
    """First-argmax mixture component per column -> its (u_x, u_y) means.

    argmax(softmax(pi)) == argmax(pi_raw), so raw logits suffice — no
    transcendentals on this path.
    TODO(synk): torch.multinomial(pi, 1) is a random draw; we implement the
    module's own deterministic argmax fallback.
    """
    k = pi_raw.shape[0]                                           # 5
    comp = jax.lax.broadcasted_iota(jnp.int32, pi_raw.shape, 0)   # (5, B)
    max_pi = jnp.max(pi_raw, axis=0, keepdims=True)
    cand = jnp.where(pi_raw == max_pi, comp, k)                   # sentinel k
    idx = jnp.min(cand, axis=0, keepdims=True)                    # first argmax
    onehot = (comp == idx).astype(u_x.dtype)
    sel_x = jnp.sum(u_x * onehot, axis=0, keepdims=True)
    sel_y = jnp.sum(u_y * onehot, axis=0, keepdims=True)
    return sel_x, sel_y                                           # (1, B) each


# ---------------------------------------------------------------------------
# Pallas kernel: gridless, whole problem VMEM-resident, lane-dense layout.
# ---------------------------------------------------------------------------
def rel_loss_kernel(rel_p_ref, gt_ref, rel_mask_ref, sub_p_ref, obj_p_ref,
                    pair_mask_ref, xy_loss_ref, rel_loss_ref):
    # rel_p_ref : (6, 5, B)  rows = [pi, u_x, u_y, log_sx, log_sy, rho_raw]
    # gt_ref    : (2, B)     rows = [gt_x, gt_y]
    # sub/obj   : (3, 5, B)  rows = [pi, u_x, u_y]   (sigma/rho never needed)
    # masks     : (1, B)     1.0 = valid row, 0.0 = padding
    pi_raw = rel_p_ref[0]
    u_x = rel_p_ref[1]
    u_y = rel_p_ref[2]
    inv_sx = jnp.exp(-rel_p_ref[3])          # 1/sigma_x — avoids divides below
    inv_sy = jnp.exp(-rel_p_ref[4])
    rho = jnp.tanh(rel_p_ref[5])

    # softmax over the 5 mixture components (sublane axis)
    m = jnp.max(pi_raw, axis=0, keepdims=True)
    e = jnp.exp(pi_raw - m)
    pi = e * pl.reciprocal(jnp.sum(e, axis=0, keepdims=True), approx=True)

    gt_x = gt_ref[0:1, :]                    # (1, B) broadcasts over components
    gt_y = gt_ref[1:2, :]
    dx = gt_x - u_x
    dy = gt_y - u_y
    z_x = (dx * inv_sx) ** 2
    z_y = (dy * inv_sy) ** 2
    z_xy = dx * dy * (inv_sx * inv_sy)
    one_m_r2 = 1.0 - rho * rho
    z = z_x + z_y - 2.0 * rho * z_xy
    a = -z / (2.0 * one_m_r2)                # exact: this feeds the exponent
    ex = jnp.exp(a)
    # 1 / clamp(2*pi*sx*sy*sqrt(1-rho^2), 1e-5)
    #   == min(inv_sx*inv_sy / (2*pi*sqrt(1-rho^2)), 1e5)
    inv_norm = jnp.minimum(
        (inv_sx * inv_sy)
        * pl.reciprocal(2.0 * math.pi * jnp.sqrt(one_m_r2), approx=True),
        1e5)
    mix = jnp.sum(pi * ex * inv_norm, axis=0, keepdims=True) + 1e-5   # (1, B)
    log_pdf = jnp.log(mix) * rel_mask_ref[...]       # padded rows -> exactly 0
    rel_loss_ref[0, 0] = -jnp.sum(log_pdf)

    # greedy relation offset + subject/object box means (raw logits only)
    rel_x, rel_y = _greedy_means(pi_raw, u_x, u_y)
    sub_x, sub_y = _greedy_means(sub_p_ref[0], sub_p_ref[1], sub_p_ref[2])
    obj_x, obj_y = _greedy_means(obj_p_ref[0], obj_p_ref[1], obj_p_ref[2])

    # F.mse_loss(sub - obj, sample_rel, reduction='sum'), masked to valid pairs
    pm = pair_mask_ref[...]
    ddx = ((sub_x - obj_x) - rel_x) * pm
    ddy = ((sub_y - obj_y) - rel_y) * pm
    xy_loss_ref[0, 0] = jnp.sum(ddx * ddx + ddy * ddy)


def _pallas_rel_loss(rel_p, gt, rel_mask, sub_p, obj_p, pair_mask):
    vmem = pl.BlockSpec(memory_space=pltpu.MemorySpace.VMEM)
    smem = pl.BlockSpec(memory_space=pltpu.MemorySpace.SMEM)
    xy, rel = pl.pallas_call(
        rel_loss_kernel,
        in_specs=[vmem, vmem, vmem, vmem, vmem, vmem],
        out_specs=(smem, smem),
        out_shape=(jax.ShapeDtypeStruct((1, 1), jnp.float32),
                   jax.ShapeDtypeStruct((1, 1), jnp.float32)),
    )(rel_p, gt, rel_mask, sub_p, obj_p, pair_mask)
    return xy[0, 0], rel[0, 0]


# ---------------------------------------------------------------------------
# Jittable glue: static-size compaction + lane-dense slab layout.
# ---------------------------------------------------------------------------
def _compact_rows(rows, mask, out_rows):
    """Scatter mask-selected rows (preserving order) into a zero buffer."""
    pos = jnp.cumsum(mask.astype(jnp.int32)) - 1
    pos = jnp.where(mask, pos, out_rows)            # invalid rows -> dropped
    out = jnp.zeros((out_rows, rows.shape[1]), rows.dtype)
    return out.at[pos].set(rows, mode='drop')


def rel_loss_forward(gmm, xywh_gt, reduction='sum', raw_batch_size=64):
    gmm_box = gmm[1::2]
    gmm_rel = gmm[2::2]
    xywh_box = xywh_gt[1::2]
    xywh_rel = xywh_gt[2::2]

    box_mask = xywh_box[:, 0] != 2.0
    rel_mask = xywh_rel[:, 0] != 2.0
    n_boxes = jnp.sum(box_mask.astype(jnp.int32))
    n_rel = jnp.sum(rel_mask.astype(jnp.int32))
    n_pairs = n_boxes // 2

    # Pairing sanity check (needs a host value) — only possible outside jit.
    try:
        assert int(n_boxes) % 2 == 0, 'pretrain boxes should be paired!'
    except jax.errors.ConcretizationTypeError:
        pass  # under jit: skipped, avoids a device->host sync

    f32 = jnp.float32
    # Boxes: only pi / u_x / u_y (cols 0:15) are ever consumed by the kernel.
    box_c = _compact_rows(gmm_box[:, :3 * GMM_COMP].astype(f32),
                          box_mask, 2 * PAD_B)                       # (2B, 15)
    rel_c = _compact_rows(gmm_rel[:, :GMM_FEAT].astype(f32),
                          rel_mask, PAD_B)                           # (B, 30)
    gt_c = _compact_rows(xywh_rel[:, :2].astype(f32), rel_mask, PAD_B)

    # Lane-dense slabs: components on sublanes, padded batch on lanes.
    rel_p = rel_c.reshape(PAD_B, 6, GMM_COMP).transpose(1, 2, 0)        # (6,5,B)
    sub_p = box_c[0::2].reshape(PAD_B, 3, GMM_COMP).transpose(1, 2, 0)  # (3,5,B)
    obj_p = box_c[1::2].reshape(PAD_B, 3, GMM_COMP).transpose(1, 2, 0)  # (3,5,B)
    gt = gt_c.T                                                         # (2, B)

    lane = jnp.arange(PAD_B, dtype=jnp.int32)
    rel_valid = (lane < n_rel).astype(f32).reshape(1, PAD_B)
    pair_valid = (lane < n_pairs).astype(f32).reshape(1, PAD_B)

    xy_loss, rel_loss = _pallas_rel_loss(rel_p, gt, rel_valid,
                                         sub_p, obj_p, pair_valid)

    if reduction == 'mean':
        bs = n_boxes.astype(f32)      # number of non-ignored box rows
        return xy_loss / bs * raw_batch_size, rel_loss / bs * raw_batch_size
    return xy_loss, rel_loss


# ---------------------------------------------------------------------------
# Pure-JAX reference (same deterministic argmax sampling) for a sanity check.
# ---------------------------------------------------------------------------
def _reference(gmm, xywh_gt):
    def params(g):
        pi, ux, uy, sx, sy, rho = jnp.split(g, 6, axis=1)
        return (jax.nn.softmax(pi, axis=1), ux, uy,
                jnp.exp(sx), jnp.exp(sy), jnp.tanh(rho))

    def greedy(pi, ux, uy):
        idx = jnp.argmax(pi, axis=1)
        return jnp.stack([ux[jnp.arange(pi.shape[0]), idx],
                          uy[jnp.arange(pi.shape[0]), idx]], axis=1)

    gmm_box, gmm_rel = gmm[1::2], gmm[2::2]
    xywh_box, xywh_rel = xywh_gt[1::2], xywh_gt[2::2]
    gmm_box = gmm_box[xywh_box[:, 0] != 2.0][:, :GMM_FEAT]
    m_rel = xywh_rel[:, 0] != 2.0
    gmm_rel = gmm_rel[m_rel][:, :GMM_FEAT]
    xywh_rel = xywh_rel[m_rel]

    pi, ux, uy, sx, sy, rho = params(gmm_rel)
    gx, gy = xywh_rel[:, 0:1], xywh_rel[:, 1:2]
    dx, dy = gx - ux, gy - uy
    z = (dx / sx) ** 2 + (dy / sy) ** 2 - 2 * rho * dx * dy / (sx * sy)
    ex = jnp.exp(-z / (2 * (1 - rho ** 2)))
    norm = jnp.maximum(2 * math.pi * sx * sy * jnp.sqrt(1 - rho ** 2), 1e-5)
    rel_loss = -jnp.sum(jnp.log(jnp.sum(pi * ex / norm, axis=1) + 1e-5))
    sample_rel = greedy(pi, ux, uy)

    pib, uxb, uyb, *_ = params(gmm_box)
    sample_xy = greedy(pib, uxb, uyb)
    diff = sample_xy[0::2] - sample_xy[1::2] - sample_rel
    return jnp.sum(diff ** 2), rel_loss


if __name__ == "__main__":
    key = jax.random.PRNGKey(0)
    k1, k2 = jax.random.split(key)

    N = 17                      # rows 1,3,...,15 -> 8 boxes; 2,4,...,16 -> 8 rels
    gmm = jax.random.normal(k1, (N, GMM_FEAT), dtype=jnp.float32)
    xywh_gt = jax.random.uniform(k2, (N, 4), dtype=jnp.float32)

    # mark 4 of the 8 relation rows as ignored (first coord == 2.0),
    # leaving 4 relations and 8 (= 2*4) paired boxes.
    for r in (2, 6, 10, 14):
        xywh_gt = xywh_gt.at[r, 0].set(2.0)

    fwd = jax.jit(rel_loss_forward,
                  static_argnames=('reduction', 'raw_batch_size'))
    xy_loss, rel_loss = fwd(gmm, xywh_gt)
    jax.block_until_ready((xy_loss, rel_loss))

    ref_xy, ref_rel = _reference(gmm, xywh_gt)
    # tolerance slightly relaxed for the approx=True EUP reciprocals in-kernel
    assert jnp.allclose(xy_loss, ref_xy, rtol=2e-3, atol=2e-3), (xy_loss, ref_xy)
    assert jnp.allclose(rel_loss, ref_rel, rtol=2e-3, atol=2e-3), (rel_loss, ref_rel)

    print("KERNEL_OK")
</pallas_src>

<mosaic_0001>
module attributes {stable_mosaic.version = 11 : i64} {
  func.func @rel_loss_kernel(%arg0: memref<6x5x128xf32, #tpu.memory_space<vmem>>, %arg1: memref<2x128xf32, #tpu.memory_space<vmem>>, %arg2: memref<1x128xf32, #tpu.memory_space<vmem>>, %arg3: memref<3x5x128xf32, #tpu.memory_space<vmem>>, %arg4: memref<3x5x128xf32, #tpu.memory_space<vmem>>, %arg5: memref<1x128xf32, #tpu.memory_space<vmem>>, %arg6: memref<1x1xf32, #tpu.memory_space<smem>>, %arg7: memref<1x1xf32, #tpu.memory_space<smem>>) attributes {dimension_semantics = [], scalar_prefetch = 0 : i64, scratch_operands = 0 : i64, tpu.core_type = #tpu.core_type<tc>} {
    %c0 = arith.constant 0 : index
    %c0_0 = arith.constant 0 : index
    %c0_1 = arith.constant 0 : index
    %0 = vector.load %arg0[%c0, %c0_0, %c0_1] : memref<6x5x128xf32, #tpu.memory_space<vmem>>, vector<1x5x128xf32>
    %1 = vector.shape_cast %0 : vector<1x5x128xf32> to vector<5x128xf32>
    %c1 = arith.constant 1 : index
    %c0_2 = arith.constant 0 : index
    %c0_3 = arith.constant 0 : index
    %2 = vector.load %arg0[%c1, %c0_2, %c0_3] : memref<6x5x128xf32, #tpu.memory_space<vmem>>, vector<1x5x128xf32>
    %3 = vector.shape_cast %2 : vector<1x5x128xf32> to vector<5x128xf32>
    %c2 = arith.constant 2 : index
    %c0_4 = arith.constant 0 : index
    %c0_5 = arith.constant 0 : index
    %4 = vector.load %arg0[%c2, %c0_4, %c0_5] : memref<6x5x128xf32, #tpu.memory_space<vmem>>, vector<1x5x128xf32>
    %5 = vector.shape_cast %4 : vector<1x5x128xf32> to vector<5x128xf32>
    %c3 = arith.constant 3 : index
    %c0_6 = arith.constant 0 : index
    %c0_7 = arith.constant 0 : index
    %6 = vector.load %arg0[%c3, %c0_6, %c0_7] : memref<6x5x128xf32, #tpu.memory_space<vmem>>, vector<1x5x128xf32>
    %7 = vector.shape_cast %6 : vector<1x5x128xf32> to vector<5x128xf32>
    %cst = arith.constant 0.000000e+00 : f32
    %8 = vector.broadcast %cst : f32 to vector<5x128xf32>
    %9 = arith.subf %8, %7 : vector<5x128xf32>
    %10 = math.exp %9 : vector<5x128xf32>
    %c4 = arith.constant 4 : index
    %c0_8 = arith.constant 0 : index
    %c0_9 = arith.constant 0 : index
    %11 = vector.load %arg0[%c4, %c0_8, %c0_9] : memref<6x5x128xf32, #tpu.memory_space<vmem>>, vector<1x5x128xf32>
    %12 = vector.shape_cast %11 : vector<1x5x128xf32> to vector<5x128xf32>
    %cst_10 = arith.constant 0.000000e+00 : f32
    %13 = vector.broadcast %cst_10 : f32 to vector<5x128xf32>
    %14 = arith.subf %13, %12 : vector<5x128xf32>
    %15 = math.exp %14 : vector<5x128xf32>
    %c5 = arith.constant 5 : index
    %c0_11 = arith.constant 0 : index
    %c0_12 = arith.constant 0 : index
    %16 = vector.load %arg0[%c5, %c0_11, %c0_12] : memref<6x5x128xf32, #tpu.memory_space<vmem>>, vector<1x5x128xf32>
    %17 = vector.shape_cast %16 : vector<1x5x128xf32> to vector<5x128xf32>
    %18 = math.tanh %17 : vector<5x128xf32>
    %cst_13 = arith.constant dense<0xFF800000> : vector<128xf32>
    %19 = vector.multi_reduction <maximumf>, %1, %cst_13 [0] : vector<5x128xf32> to vector<128xf32>
    %20 = vector.shape_cast %19 : vector<128xf32> to vector<1x128xf32>
    %21 = vector.broadcast %20 : vector<1x128xf32> to vector<5x128xf32>
    %22 = arith.subf %1, %21 : vector<5x128xf32>
    %23 = math.exp %22 : vector<5x128xf32>
    %cst_14 = arith.constant dense<0.000000e+00> : vector<128xf32>
    %24 = vector.multi_reduction <add>, %23, %cst_14 [0] : vector<5x128xf32> to vector<128xf32>
    %25 = vector.shape_cast %24 : vector<128xf32> to vector<1x128xf32>
    %26 = tpu.reciprocal %25 {approx = true} : vector<1x128xf32> -> vector<1x128xf32>
    %27 = vector.broadcast %26 : vector<1x128xf32> to vector<5x128xf32>
    %28 = arith.mulf %23, %27 : vector<5x128xf32>
    %c0_15 = arith.constant 0 : index
    %c0_16 = arith.constant 0 : index
    %29 = vector.load %arg1[%c0_15, %c0_16] : memref<2x128xf32, #tpu.memory_space<vmem>>, vector<1x128xf32>
    %c1_17 = arith.constant 1 : index
    %c0_18 = arith.constant 0 : index
    %30 = vector.load %arg1[%c1_17, %c0_18] : memref<2x128xf32, #tpu.memory_space<vmem>>, vector<1x128xf32>
    %31 = vector.broadcast %29 : vector<1x128xf32> to vector<5x128xf32>
    %32 = arith.subf %31, %3 : vector<5x128xf32>
    %33 = vector.broadcast %30 : vector<1x128xf32> to vector<5x128xf32>
    %34 = arith.subf %33, %5 : vector<5x128xf32>
    %35 = arith.mulf %32, %10 : vector<5x128xf32>
    %36 = arith.mulf %35, %35 : vector<5x128xf32>
    %37 = arith.mulf %34, %15 : vector<5x128xf32>
    %38 = arith.mulf %37, %37 : vector<5x128xf32>
    %39 = arith.mulf %32, %34 : vector<5x128xf32>
    %40 = arith.mulf %10, %15 : vector<5x128xf32>
    %41 = arith.mulf %39, %40 : vector<5x128xf32>
    %42 = arith.mulf %18, %18 : vector<5x128xf32>
    %cst_19 = arith.constant 1.000000e+00 : f32
    %43 = vector.broadcast %cst_19 : f32 to vector<5x128xf32>
    %44 = arith.subf %43, %42 : vector<5x128xf32>
    %45 = arith.addf %36, %38 : vector<5x128xf32>
    %cst_20 = arith.constant 2.000000e+00 : f32
    %46 = vector.broadcast %cst_20 : f32 to vector<5x128xf32>
    %47 = arith.mulf %46, %18 : vector<5x128xf32>
    %48 = arith.mulf %47, %41 : vector<5x128xf32>
    %49 = arith.subf %45, %48 : vector<5x128xf32>
    %cst_21 = arith.constant 0.000000e+00 : f32
    %50 = vector.broadcast %cst_21 : f32 to vector<5x128xf32>
    %51 = arith.subf %50, %49 : vector<5x128xf32>
    %cst_22 = arith.constant 2.000000e+00 : f32
    %52 = vector.broadcast %cst_22 : f32 to vector<5x128xf32>
    %53 = arith.mulf %52, %44 : vector<5x128xf32>
    %54 = arith.divf %51, %53 : vector<5x128xf32>
    %55 = math.exp %54 : vector<5x128xf32>
    %56 = arith.mulf %10, %15 : vector<5x128xf32>
    %57 = math.sqrt %44 : vector<5x128xf32>
    %cst_23 = arith.constant 6.28318548 : f32
    %58 = vector.broadcast %cst_23 : f32 to vector<5x128xf32>
    %59 = arith.mulf %58, %57 : vector<5x128xf32>
    %60 = tpu.reciprocal %59 {approx = true} : vector<5x128xf32> -> vector<5x128xf32>
    %61 = arith.mulf %56, %60 : vector<5x128xf32>
    %cst_24 = arith.constant 1.000000e+05 : f32
    %62 = vector.broadcast %cst_24 : f32 to vector<5x128xf32>
    %63 = arith.minimumf %61, %62 : vector<5x128xf32>
    %64 = arith.mulf %28, %55 : vector<5x128xf32>
    %65 = arith.mulf %64, %63 : vector<5x128xf32>
    %cst_25 = arith.constant dense<0.000000e+00> : vector<128xf32>
    %66 = vector.multi_reduction <add>, %65, %cst_25 [0] : vector<5x128xf32> to vector<128xf32>
    %67 = vector.shape_cast %66 : vector<128xf32> to vector<1x128xf32>
    %cst_26 = arith.constant 9.99999974E-6 : f32
    %68 = vector.broadcast %cst_26 : f32 to vector<1x128xf32>
    %69 = arith.addf %67, %68 : vector<1x128xf32>
    %70 = math.log %69 : vector<1x128xf32>
    %c0_27 = arith.constant 0 : index
    %c0_28 = arith.constant 0 : index
    %71 = vector.load %arg2[%c0_27, %c0_28] : memref<1x128xf32, #tpu.memory_space<vmem>>, vector<1x128xf32>
    %72 = arith.mulf %70, %71 : vector<1x128xf32>
    %73 = vector.shape_cast %72 : vector<1x128xf32> to vector<1x1x128xf32>
    %cst_29 = arith.constant dense<0.000000e+00> : vector<1xf32>
    %74 = vector.multi_reduction <add>, %73, %cst_29 [1, 2] : vector<1x1x128xf32> to vector<1xf32>
    %75 = vector.shape_cast %74 : vector<1xf32> to vector<1x1x1xf32>
    %76 = vector.extract %75[0, 0, 0] : f32 from vector<1x1x1xf32>
    %cst_30 = arith.constant 0.000000e+00 : f32
    %77 = arith.subf %cst_30, %76 : f32
    %c0_31 = arith.constant 0 : index
    %c0_32 = arith.constant 0 : index
    %78 = memref.load %arg7[%c0_31, %c0_32] : memref<1x1xf32, #tpu.memory_space<smem>>
    memref.store %77, %arg7[%c0_31, %c0_32] : memref<1x1xf32, #tpu.memory_space<smem>>
    %79 = tpu.iota {dimensions = array<i32: 0>} : vector<5x128xi32>
    %cst_33 = arith.constant dense<0xFF800000> : vector<128xf32>
    %80 = vector.multi_reduction <maximumf>, %1, %cst_33 [0] : vector<5x128xf32> to vector<128xf32>
    %81 = vector.shape_cast %80 : vector<128xf32> to vector<1x128xf32>
    %82 = vector.broadcast %81 : vector<1x128xf32> to vector<5x128xf32>
    %83 = arith.cmpf oeq, %1, %82 : vector<5x128xf32>
    %c5_i32 = arith.constant 5 : i32
    %84 = vector.broadcast %c5_i32 : i32 to vector<5x128xi32>
    %85 = arith.select %83, %79, %84 : vector<5x128xi1>, vector<5x128xi32>
    %cst_34 = arith.constant dense<2147483647> : vector<128xi32>
    %86 = vector.multi_reduction <minsi>, %85, %cst_34 [0] : vector<5x128xi32> to vector<128xi32>
    %87 = vector.shape_cast %86 : vector<128xi32> to vector<1x128xi32>
    %88 = vector.broadcast %87 : vector<1x128xi32> to vector<5x128xi32>
    %89 = arith.cmpi eq, %79, %88 : vector<5x128xi32>
    %90 = arith.extui %89 : vector<5x128xi1> to vector<5x128xi32>
    %91 = arith.sitofp %90 : vector<5x128xi32> to vector<5x128xf32>
    %92 = arith.mulf %3, %91 : vector<5x128xf32>
    %cst_35 = arith.constant dense<0.000000e+00> : vector<128xf32>
    %93 = vector.multi_reduction <add>, %92, %cst_35 [0] : vector<5x128xf32> to vector<128xf32>
    %94 = vector.shape_cast %93 : vector<128xf32> to vector<1x128xf32>
    %95 = arith.mulf %5, %91 : vector<5x128xf32>
    %cst_36 = arith.constant dense<0.000000e+00> : vector<128xf32>
    %96 = vector.multi_reduction <add>, %95, %cst_36 [0] : vector<5x128xf32> to vector<128xf32>
    %97 = vector.shape_cast %96 : vector<128xf32> to vector<1x128xf32>
    %c0_37 = arith.constant 0 : index
    %c0_38 = arith.constant 0 : index
    %c0_39 = arith.constant 0 : index
    %98 = vector.load %arg3[%c0_37, %c0_38, %c0_39] : memref<3x5x128xf32, #tpu.memory_space<vmem>>, vector<1x5x128xf32>
    %99 = vector.shape_cast %98 : vector<1x5x128xf32> to vector<5x128xf32>
    %c1_40 = arith.constant 1 : index
    %c0_41 = arith.constant 0 : index
    %c0_42 = arith.constant 0 : index
    %100 = vector.load %arg3[%c1_40, %c0_41, %c0_42] : memref<3x5x128xf32, #tpu.memory_space<vmem>>, vector<1x5x128xf32>
    %101 = vector.shape_cast %100 : vector<1x5x128xf32> to vector<5x128xf32>
    %c2_43 = arith.constant 2 : index
    %c0_44 = arith.constant 0 : index
    %c0_45 = arith.constant 0 : index
    %102 = vector.load %arg3[%c2_43, %c0_44, %c0_45] : memref<3x5x128xf32, #tpu.memory_space<vmem>>, vector<1x5x128xf32>
    %103 = vector.shape_cast %102 : vector<1x5x128xf32> to vector<5x128xf32>
    %104 = tpu.iota {dimensions = array<i32: 0>} : vector<5x128xi32>
    %cst_46 = arith.constant dense<0xFF800000> : vector<128xf32>
    %105 = vector.multi_reduction <maximumf>, %99, %cst_46 [0] : vector<5x128xf32> to vector<128xf32>
    %106 = vector.shape_cast %105 : vector<128xf32> to vector<1x128xf32>
    %107 = vector.broadcast %106 : vector<1x128xf32> to vector<5x128xf32>
    %108 = arith.cmpf oeq, %99, %107 : vector<5x128xf32>
    %c5_i32_47 = arith.constant 5 : i32
    %109 = vector.broadcast %c5_i32_47 : i32 to vector<5x128xi32>
    %110 = arith.select %108, %104, %109 : vector<5x128xi1>, vector<5x128xi32>
    %cst_48 = arith.constant dense<2147483647> : vector<128xi32>
    %111 = vector.multi_reduction <minsi>, %110, %cst_48 [0] : vector<5x128xi32> to vector<128xi32>
    %112 = vector.shape_cast %111 : vector<128xi32> to vector<1x128xi32>
    %113 = vector.broadcast %112 : vector<1x128xi32> to vector<5x128xi32>
    %114 = arith.cmpi eq, %104, %113 : vector<5x128xi32>
    %115 = arith.extui %114 : vector<5x128xi1> to vector<5x128xi32>
    %116 = arith.sitofp %115 : vector<5x128xi32> to vector<5x128xf32>
    %117 = arith.mulf %101, %116 : vector<5x128xf32>
    %cst_49 = arith.constant dense<0.000000e+00> : vector<128xf32>
    %118 = vector.multi_reduction <add>, %117, %cst_49 [0] : vector<5x128xf32> to vector<128xf32>
    %119 = vector.shape_cast %118 : vector<128xf32> to vector<1x128xf32>
    %120 = arith.mulf %103, %116 : vector<5x128xf32>
    %cst_50 = arith.constant dense<0.000000e+00> : vector<128xf32>
    %121 = vector.multi_reduction <add>, %120, %cst_50 [0] : vector<5x128xf32> to vector<128xf32>
    %122 = vector.shape_cast %121 : vector<128xf32> to vector<1x128xf32>
    %c0_51 = arith.constant 0 : index
    %c0_52 = arith.constant 0 : index
    %c0_53 = arith.constant 0 : index
    %123 = vector.load %arg4[%c0_51, %c0_52, %c0_53] : memref<3x5x128xf32, #tpu.memory_space<vmem>>, vector<1x5x128xf32>
    %124 = vector.shape_cast %123 : vector<1x5x128xf32> to vector<5x128xf32>
    %c1_54 = arith.constant 1 : index
    %c0_55 = arith.constant 0 : index
    %c0_56 = arith.constant 0 : index
    %125 = vector.load %arg4[%c1_54, %c0_55, %c0_56] : memref<3x5x128xf32, #tpu.memory_space<vmem>>, vector<1x5x128xf32>
    %126 = vector.shape_cast %125 : vector<1x5x128xf32> to vector<5x128xf32>
    %c2_57 = arith.constant 2 : index
    %c0_58 = arith.constant 0 : index
    %c0_59 = arith.constant 0 : index
    %127 = vector.load %arg4[%c2_57, %c0_58, %c0_59] : memref<3x5x128xf32, #tpu.memory_space<vmem>>, vector<1x5x128xf32>
    %128 = vector.shape_cast %127 : vector<1x5x128xf32> to vector<5x128xf32>
    %129 = tpu.iota {dimensions = array<i32: 0>} : vector<5x128xi32>
    %cst_60 = arith.constant dense<0xFF800000> : vector<128xf32>
    %130 = vector.multi_reduction <maximumf>, %124, %cst_60 [0] : vector<5x128xf32> to vector<128xf32>
    %131 = vector.shape_cast %130 : vector<128xf32> to vector<1x128xf32>
    %132 = vector.broadcast %131 : vector<1x128xf32> to vector<5x128xf32>
    %133 = arith.cmpf oeq, %124, %132 : vector<5x128xf32>
    %c5_i32_61 = arith.constant 5 : i32
    %134 = vector.broadcast %c5_i32_61 : i32 to vector<5x128xi32>
    %135 = arith.select %133, %129, %134 : vector<5x128xi1>, vector<5x128xi32>
    %cst_62 = arith.constant dense<2147483647> : vector<128xi32>
    %136 = vector.multi_reduction <minsi>, %135, %cst_62 [0] : vector<5x128xi32> to vector<128xi32>
    %137 = vector.shape_cast %136 : vector<128xi32> to vector<1x128xi32>
    %138 = vector.broadcast %137 : vector<1x128xi32> to vector<5x128xi32>
    %139 = arith.cmpi eq, %129, %138 : vector<5x128xi32>
    %140 = arith.extui %139 : vector<5x128xi1> to vector<5x128xi32>
    %141 = arith.sitofp %140 : vector<5x128xi32> to vector<5x128xf32>
    %142 = arith.mulf %126, %141 : vector<5x128xf32>
    %cst_63 = arith.constant dense<0.000000e+00> : vector<128xf32>
    %143 = vector.multi_reduction <add>, %142, %cst_63 [0] : vector<5x128xf32> to vector<128xf32>
    %144 = vector.shape_cast %143 : vector<128xf32> to vector<1x128xf32>
    %145 = arith.mulf %128, %141 : vector<5x128xf32>
    %cst_64 = arith.constant dense<0.000000e+00> : vector<128xf32>
    %146 = vector.multi_reduction <add>, %145, %cst_64 [0] : vector<5x128xf32> to vector<128xf32>
    %147 = vector.shape_cast %146 : vector<128xf32> to vector<1x128xf32>
    %c0_65 = arith.constant 0 : index
    %c0_66 = arith.constant 0 : index
    %148 = vector.load %arg5[%c0_65, %c0_66] : memref<1x128xf32, #tpu.memory_space<vmem>>, vector<1x128xf32>
    %149 = arith.subf %119, %144 : vector<1x128xf32>
    %150 = arith.subf %149, %94 : vector<1x128xf32>
    %151 = arith.mulf %150, %148 : vector<1x128xf32>
    %152 = arith.subf %122, %147 : vector<1x128xf32>
    %153 = arith.subf %152, %97 : vector<1x128xf32>
    %154 = arith.mulf %153, %148 : vector<1x128xf32>
    %155 = arith.mulf %151, %151 : vector<1x128xf32>
    %156 = arith.mulf %154, %154 : vector<1x128xf32>
    %157 = arith.addf %155, %156 : vector<1x128xf32>
    %158 = vector.shape_cast %157 : vector<1x128xf32> to vector<1x1x128xf32>
    %cst_67 = arith.constant dense<0.000000e+00> : vector<1xf32>
    %159 = vector.multi_reduction <add>, %158, %cst_67 [1, 2] : vector<1x1x128xf32> to vector<1xf32>
    %160 = vector.shape_cast %159 : vector<1xf32> to vector<1x1x1xf32>
    %161 = vector.extract %160[0, 0, 0] : f32 from vector<1x1x1xf32>
    %c0_68 = arith.constant 0 : index
    %c0_69 = arith.constant 0 : index
    %162 = memref.load %arg6[%c0_68, %c0_69] : memref<1x1xf32, #tpu.memory_space<smem>>
    memref.store %161, %arg6[%c0_68, %c0_69] : memref<1x1xf32, #tpu.memory_space<smem>>
    return
  }
}

</mosaic_0001>

<llo_original>
// kernel: rel_loss_forward.1
$region0: #{rel_loss_forward.1}
  #allocation0 [shape = 'u32[]', space=smem, size = 0x4, offset = 0x4, fixed_abs, tag = 'smem constant byte address 0x4 - core index']
  #allocation1 [shape = 'u32[144,128]{1,0:T(1,128)}', space=vmem, size = 0x12000, scoped, tag = 'internal scratch']
  %s0 = inlined_call_operand.vmem [shape: f32[6,5,128], index: 0, kind: input, shape index: {}]
  %s1 = inlined_call_operand.vmem [shape: f32[2,128], index: 1, kind: input, shape index: {}]
  %s2 = inlined_call_operand.vmem [shape: f32[1,128], index: 2, kind: input, shape index: {}]
  %s3 = inlined_call_operand.vmem [shape: f32[3,5,128], index: 3, kind: input, shape index: {}]
  %s4 = inlined_call_operand.vmem [shape: f32[3,5,128], index: 4, kind: input, shape index: {}]
  %s5 = inlined_call_operand.vmem [shape: f32[1,128], index: 5, kind: input, shape index: {}]
  %s6 = inlined_call_operand.hbm [shape: f32[1,1], index: 6, kind: output, shape index: {0}]
  %s7 = inlined_call_operand.hbm [shape: f32[1,1], index: 7, kind: output, shape index: {1}]
  %8 = xla_tuple %s6, %s7
  %s9 = sld [smem:[#allocation0]]
  $region42: #{rel_loss_forward.1} parent=0
    _
  %s11 = ssub.s32 1, %s9
  %s12 = scalar_select 0, %s11, %s9
  $region1: #{rel_loss_forward.1} parent=0
    #allocation2 [shape = 'u8[512]{0}', space=smem, size = 0x200, scoped, tag = 'output window, operand 0, single buffered']
    #allocation3 [shape = 's32[1]{0}', space=sflag, size = 0x4, scoped, tag = 'scoped memory for rel_loss_forward.1']
    #allocation4 [shape = 'u8[512]{0}', space=smem, size = 0x200, scoped, tag = 'output window, operand 1, single buffered']
    #allocation5 [shape = 's32[1]{0}', space=sflag, size = 0x4, scoped, tag = 'scoped memory for rel_loss_forward.1']
    %13 = vsyncpa [#allocation3], 0
    %14 = vsyncpa [#allocation5], 0
    // Predicated region
    $region2: #{rel_loss_forward.1} parent=1 // pred_check
      _
    $region3: #{rel_loss_forward.1} parent=1 // pred_check_branch
      %16 = sbr.rel (0) target = $region5
    $region4: #{rel_loss_forward.1} parent=1 // pred_region
      _
    $region5: #{rel_loss_forward.1} parent=1 // pred_fallthru
      _
    // Predicated region
    $region6: #{rel_loss_forward.1} parent=1 // pred_check
      _
    $region7: #{rel_loss_forward.1} parent=1 // pred_check_branch
      %18 = sbr.rel (0) target = $region9
    $region8: #{rel_loss_forward.1} parent=1 // pred_region
      _
    $region9: #{rel_loss_forward.1} parent=1 // pred_fallthru
      _
    // Predicated region
    $region10: #{rel_loss_forward.1} parent=1 // pred_check
      _
    $region11: #{rel_loss_forward.1} parent=1 // pred_check_branch
      %20 = sbr.rel (0) target = $region13
    $region12: #{rel_loss_forward.1} parent=1 // pred_region
      _
    $region13: #{rel_loss_forward.1} parent=1 // pred_fallthru
      _
    // Predicated region
    $region14: #{rel_loss_forward.1} parent=1 // pred_check
      _
    $region15: #{rel_loss_forward.1} parent=1 // pred_check_branch
      %22 = sbr.rel (0) target = $region17
    $region16: #{rel_loss_forward.1} parent=1 // pred_region
      _
    $region17: #{rel_loss_forward.1} parent=1 // pred_fallthru
      _
    // Predicated region
    $region18: #{rel_loss_forward.1} parent=1 // pred_check
      _
    $region19: #{rel_loss_forward.1} parent=1 // pred_check_branch
      %24 = sbr.rel (0) target = $region21
    $region20: #{rel_loss_forward.1} parent=1 // pred_region
      _
    $region21: #{rel_loss_forward.1} parent=1 // pred_fallthru
      _
    // Predicated region
    $region22: #{rel_loss_forward.1} parent=1 // pred_check
      _
    $region23: #{rel_loss_forward.1} parent=1 // pred_check_branch
      %26 = sbr.rel (0) target = $region25
    $region24: #{rel_loss_forward.1} parent=1 // pred_region
      _
    $region25: #{rel_loss_forward.1} parent=1 // pred_fallthru
      _
    %v27 = vld [vmem:[%s0] sm:$0x1f]
    %s28 = scalar_lea.vmem %s0, 8
    %v29 = vld [vmem:[%s28] sm:$0x1f]
    %s30 = scalar_lea.vmem %s0, 16
    %v31 = vld [vmem:[%s30] sm:$0x1f]
    %s32 = scalar_lea.vmem %s0, 24
    %v33 = vld [vmem:[%s32] sm:$0x1f]
    %v34 = vsub.f32 0.0, %v33
    %v35 = vmul.f32 %v34, 1.442695
    %v36 = vpow.pop %v35
    %s37 = scalar_lea.vmem %s0, 32
    %v38 = vld [vmem:[%s37] sm:$0x1f]
    %v39 = vsub.f32 0.0, %v38
    %v40 = vmul.f32 %v39, 1.442695
    %v41 = vpow.pop %v40
    %s42 = scalar_lea.vmem %s0, 40
    %v43 = vld [vmem:[%s42] sm:$0x1f]
    %v44 = vtanh.pop %v43
    %vm45 = vcmask 1044480
    %v46 = vsel %vm45, %v27, -inf
    %v47 = vrot.slane %v46, 4
    %v48 = vmax.f32 %v46, %v47
    %v49 = vrot.slane %v48, 2
    %v50 = vmax.f32 %v48, %v49
    %v51 = vrot.slane %v50, 1
    %v52 = vmax.f32 %v50, %v51
    %v53 = vsub.f32 %v27, %v52
    %v54 = vmul.f32 %v53, 1.442695
    %v55 = vpow.pop %v54
    %v56 = vsel %vm45, %v55, 0.0
    %v57 = vrot.slane %v56, 4
    %v58 = vadd.f32 %v56, %v57
    %v59 = vrot.slane %v58, 2
    %v60 = vadd.f32 %v58, %v59
    %v61 = vrot.slane %v60, 1
    %v62 = vadd.f32 %v60, %v61
    %v63 = vrcp.pop %v62
    %v64 = vmul.f32 %v55, %v63
    %v65 = vld [vmem:[%s1] sm:$0x1]
    %v66 = vld [vmem:[%s1 + $0x1] sm:$0x1]
    %v67 = vlaneseq
    %v68 = vshrl.u32 %v67, 7
    %v69 = vsub.s32 0, %v68
    %v70 = vrot.slane %v65, %v69
    %v71 = vsub.f32 %v70, %v29
    %v72 = vlaneseq
    %v73 = vshrl.u32 %v72, 7
    %v74 = vsub.s32 0, %v73
    %v75 = vrot.slane %v66, %v74
    %v76 = vsub.f32 %v75, %v31
    %v77 = vmul.f32 %v71, %v36
    %v78 = vmul.f32 %v77, %v77
    %v79 = vmul.f32 %v76, %v41
    %v80 = vmul.f32 %v79, %v79
    %v81 = vmul.f32 %v71, %v76
    %v82 = vmul.f32 %v36, %v41
    %v83 = vmul.f32 %v81, %v82
    %v84 = vmul.f32 %v44, %v44
    %v85 = vsub.f32 1.0, %v84
    %v86 = vadd.f32 %v78, %v80
    %v87 = vmul.f32 %v44, 2.0
    %v88 = vmul.f32 %v87, %v83
    %v89 = vsub.f32 %v86, %v88
    %v90 = vsub.f32 0.0, %v89
    %v91 = vmul.f32 %v85, 2.0
    %v92 = vrcp.pop %v91
    %v93 = vmul.f32 %v90, %v92
    %v94 = vmul.f32 %v93, 1.442695
    %v95 = vpow.pop %v94
    %v96 = vrsqrt.pop %v85
    %v97 = vmul.f32 %v85, %v96
    %vm98 = vcmp.eq.f32.partialorder %v85, inf
    %v99 = vsel %vm98, %v85, %v97
    %vm100 = vcmp.eq.f32.partialorder %v85, 0.0
    %v101 = vand.u32 %v85, 2147483648
    %v102 = vsel %vm100, %v101, %v99
    %v103 = vmul.f32 %v102, 6.2831855
    %v104 = vrcp.pop %v103
    %v105 = vmul.f32 %v82, %v104
    %v106 = vmin.f32 %v105, 100000.0
    %v107 = vmul.f32 %v64, %v95
    %v108 = vmul.f32 %v107, %v106
    %v109 = vsel %vm45, %v108, 0.0
    %v110 = vrot.slane %v109, 4
    %v111 = vadd.f32 %v109, %v110
    %v112 = vrot.slane %v111, 2
    %v113 = vadd.f32 %v111, %v112
    %v114 = vrot.slane %v113, 1
    %v115 = vadd.f32 %v113, %v114
    %v116 = vadd.f32 %v115, 1e-05
    %v117 = vlog2.pop %v116
    %v118 = vmul.f32 %v117, 0.6931472
    %v119 = vld [vmem:[%s2] sm:$0x1]
    %v120 = vmul.f32 %v118, %v119
    %vm121 = vcmask 1040384
    %v122 = vsel %vm121, %v120, 0.0
    %123 = vadd.xlane.f32.xlu0 %v122
    %v124 = vpop.xlane.xlu0 %123
    %v125 = vrot.slane %v124, 4
    %v126 = vadd.f32 %v124, %v125
    %v127 = vrot.slane %v126, 2
    %v128 = vadd.f32 %v126, %v127
    %v129 = vrot.slane %v128, 1
    %v130 = vadd.f32 %v128, %v129
    %s131 = vtos %v130
    %s132 = ssub.f32 0.0, %s131
    %s133 = scalar_lea.smem [#allocation4], 0
    %134 = sst [smem:[%s133]] %s132
    %v135 = vlaneseq
    %v136 = vshrl.u32 %v135, 7
    %vm137 = vcmp.eq.f32.partialorder %v27, %v52
    %v138 = vsel %vm137, %v136, 5
    %v139 = vsel %vm45, %v138, 2147483647
    %v140 = vrot.slane %v139, 4
    %vm141 = vcmp.lt.s32.totalorder %v139, %v140
    %v142 = vsel %vm141, %v139, %v140
    %v143 = vrot.slane %v142, 2
    %vm144 = vcmp.lt.s32.totalorder %v142, %v143
    %v145 = vsel %vm144, %v142, %v143
    %v146 = vrot.slane %v145, 1
    %vm147 = vcmp.lt.s32.totalorder %v145, %v146
    %v148 = vsel %vm147, %v145, %v146
    %vm149 = vcmp.eq.s32.totalorder %v136, %v148
    %v150 = vsel %vm149, 1, 0
    %v151 = vcvt.s32.f32 %v150
    %v152 = vmul.f32 %v29, %v151
    %v153 = vsel %vm45, %v152, 0.0
    %v154 = vrot.slane %v153, 4
    %v155 = vadd.f32 %v153, %v154
    %v156 = vrot.slane %v155, 2
    %v157 = vadd.f32 %v155, %v156
    %v158 = vrot.slane %v157, 1
    %v159 = vadd.f32 %v157, %v158
    %v160 = vmul.f32 %v31, %v151
    %v161 = vsel %vm45, %v160, 0.0
    %v162 = vrot.slane %v161, 4
    %v163 = vadd.f32 %v161, %v162
    %v164 = vrot.slane %v163, 2
    %v165 = vadd.f32 %v163, %v164
    %v166 = vrot.slane %v165, 1
    %v167 = vadd.f32 %v165, %v166
    %v168 = vld [vmem:[%s3] sm:$0x1f]
    %s169 = scalar_lea.vmem %s3, 8
    %v170 = vld [vmem:[%s169] sm:$0x1f]
    %s171 = scalar_lea.vmem %s3, 16
    %v172 = vld [vmem:[%s171] sm:$0x1f]
    %v173 = vsel %vm45, %v168, -inf
    %v174 = vrot.slane %v173, 4
    %v175 = vmax.f32 %v173, %v174
    %v176 = vrot.slane %v175, 2
    %v177 = vmax.f32 %v175, %v176
    %v178 = vrot.slane %v177, 1
    %v179 = vmax.f32 %v177, %v178
    %vm180 = vcmp.eq.f32.partialorder %v168, %v179
    %v181 = vsel %vm180, %v136, 5
    %v182 = vsel %vm45, %v181, 2147483647
    %v183 = vrot.slane %v182, 4
    %vm184 = vcmp.lt.s32.totalorder %v182, %v183
    %v185 = vsel %vm184, %v182, %v183
    %v186 = vrot.slane %v185, 2
    %vm187 = vcmp.lt.s32.totalorder %v185, %v186
    %v188 = vsel %vm187, %v185, %v186
    %v189 = vrot.slane %v188, 1
    %vm190 = vcmp.lt.s32.totalorder %v188, %v189
    %v191 = vsel %vm190, %v188, %v189
    %vm192 = vcmp.eq.s32.totalorder %v136, %v191
    %v193 = vsel %vm192, 1, 0
    %v194 = vcvt.s32.f32 %v193
    %v195 = vmul.f32 %v170, %v194
    %v196 = vsel %vm45, %v195, 0.0
    %v197 = vrot.slane %v196, 4
    %v198 = vadd.f32 %v196, %v197
    %v199 = vrot.slane %v198, 2
    %v200 = vadd.f32 %v198, %v199
    %v201 = vrot.slane %v200, 1
    %v202 = vadd.f32 %v200, %v201
    %v203 = vmul.f32 %v172, %v194
    %v204 = vsel %vm45, %v203, 0.0
    %v205 = vrot.slane %v204, 4
    %v206 = vadd.f32 %v204, %v205
    %v207 = vrot.slane %v206, 2
    %v208 = vadd.f32 %v206, %v207
    %v209 = vrot.slane %v208, 1
    %v210 = vadd.f32 %v208, %v209
    %v211 = vld [vmem:[%s4] sm:$0x1f]
    %s212 = scalar_lea.vmem %s4, 8
    %v213 = vld [vmem:[%s212] sm:$0x1f]
    %s214 = scalar_lea.vmem %s4, 16
    %v215 = vld [vmem:[%s214] sm:$0x1f]
    %v216 = vsel %vm45, %v211, -inf
    %v217 = vrot.slane %v216, 4
    %v218 = vmax.f32 %v216, %v217
    %v219 = vrot.slane %v218, 2
    %v220 = vmax.f32 %v218, %v219
    %v221 = vrot.slane %v220, 1
    %v222 = vmax.f32 %v220, %v221
    %vm223 = vcmp.eq.f32.partialorder %v211, %v222
    %v224 = vsel %vm223, %v136, 5
    %v225 = vsel %vm45, %v224, 2147483647
    %v226 = vrot.slane %v225, 4
    %vm227 = vcmp.lt.s32.totalorder %v225, %v226
    %v228 = vsel %vm227, %v225, %v226
    %v229 = vrot.slane %v228, 2
    %vm230 = vcmp.lt.s32.totalorder %v228, %v229
    %v231 = vsel %vm230, %v228, %v229
    %v232 = vrot.slane %v231, 1
    %vm233 = vcmp.lt.s32.totalorder %v231, %v232
    %v234 = vsel %vm233, %v231, %v232
    %vm235 = vcmp.eq.s32.totalorder %v136, %v234
    %v236 = vsel %vm235, 1, 0
    %v237 = vcvt.s32.f32 %v236
    %v238 = vmul.f32 %v213, %v237
    %v239 = vsel %vm45, %v238, 0.0
    %v240 = vrot.slane %v239, 4
    %v241 = vadd.f32 %v239, %v240
    %v242 = vrot.slane %v241, 2
    %v243 = vadd.f32 %v241, %v242
    %v244 = vrot.slane %v243, 1
    %v245 = vadd.f32 %v243, %v244
    %v246 = vmul.f32 %v215, %v237
    %v247 = vsel %vm45, %v246, 0.0
    %v248 = vrot.slane %v247, 4
    %v249 = vadd.f32 %v247, %v248
    %v250 = vrot.slane %v249, 2
    %v251 = vadd.f32 %v249, %v250
    %v252 = vrot.slane %v251, 1
    %v253 = vadd.f32 %v251, %v252
    %v254 = vld [vmem:[%s5] sm:$0x1]
    %v255 = vsub.f32 %v202, %v245
    %v256 = vsub.f32 %v255, %v159
    %v257 = vmul.f32 %v256, %v254
    %v258 = vsub.f32 %v210, %v253
    %v259 = vsub.f32 %v258, %v167
    %v260 = vmul.f32 %v259, %v254
    %v261 = vmul.f32 %v257, %v257
    %v262 = vmul.f32 %v260, %v260
    %v263 = vadd.f32 %v261, %v262
    %v264 = vsel %vm121, %v263, 0.0
    %265 = vadd.xlane.f32.xlu0 %v264
    %v266 = vpop.xlane.xlu0 %265
    %v267 = vrot.slane %v266, 4
    %v268 = vadd.f32 %v266, %v267
    %v269 = vrot.slane %v268, 2
    %v270 = vadd.f32 %v268, %v269
    %v271 = vrot.slane %v270, 1
    %v272 = vadd.f32 %v270, %v271
    %s273 = vtos %v272
    %s274 = scalar_lea.smem [#allocation2], 0
    %275 = sst [smem:[%s274]] %s273
    // Predicated region
    $region26: #{rel_loss_forward.1} parent=1 // pred_check
      _
    $region27: #{rel_loss_forward.1} parent=1 // pred_check_branch
      %277 = sbr.rel (0) target = $region29
    $region28: #{rel_loss_forward.1} parent=1 // pred_region
      %s279 = ssub.s32 16, 16
      %280 = vsyncadd [#allocation3], %s279
      %283 = dma.smem_to_hbm [#allocation2], 16, %s6, [#allocation3]
    $region29: #{rel_loss_forward.1} parent=1 // pred_fallthru
      _
    // Predicated region
    $region30: #{rel_loss_forward.1} parent=1 // pred_check
      _
    $region31: #{rel_loss_forward.1} parent=1 // pred_check_branch
      %285 = sbr.rel (0) target = $region33
    $region32: #{rel_loss_forward.1} parent=1 // pred_region
      %s287 = ssub.s32 16, 16
      %288 = vsyncadd [#allocation5], %s287
      %291 = dma.smem_to_hbm [#allocation4], 16, %s7, [#allocation5]
    $region33: #{rel_loss_forward.1} parent=1 // pred_fallthru
      _
    // Predicated region
    $region34: #{rel_loss_forward.1} parent=1 // pred_check
      _
    $region35: #{rel_loss_forward.1} parent=1 // pred_check_branch
      %293 = sbr.rel (0) target = $region37
    $region36: #{rel_loss_forward.1} parent=1 // pred_region
      %294 = dma.done [#allocation3], 16
    $region37: #{rel_loss_forward.1} parent=1 // pred_fallthru
      _
    // Predicated region
    $region38: #{rel_loss_forward.1} parent=1 // pred_check
      _
    $region39: #{rel_loss_forward.1} parent=1 // pred_check_branch
      %296 = sbr.rel (0) target = $region41
    $region40: #{rel_loss_forward.1} parent=1 // pred_region
      %297 = dma.done [#allocation5], 16
    $region41: #{rel_loss_forward.1} parent=1 // pred_fallthru
      _
    %298 = sfence
    %299 = vsyncpa [#allocation3], 1
    %300 = vsyncpa [#allocation5], 1

</llo_original>
